<compile_context>
chip_gen: v5e
topology: v5e:2x2
jax: 0.10.0
libtpu: 0.0.40
codegen_flags: <defaults>
</compile_context>

<pallas_src>
import jax
import jax.numpy as jnp
from jax.experimental import pallas as pl
from jax.experimental.pallas import tpu as pltpu

LN_EPS = 1e-6  # ConvLayerNorm default


# ---------------------------------------------------------------------------
# Pallas kernel: channel-first LayerNorm on a (1, C, TL) tile
# ---------------------------------------------------------------------------
def _conv_ln_kernel(x_ref, g_ref, b_ref, o_ref):
    x = x_ref[0].astype(jnp.float32)                  # (C, TL)
    mean = jnp.mean(x, axis=0, keepdims=True)         # (1, TL) sublane reduce
    d = x - mean
    var = jnp.mean(d * d, axis=0, keepdims=True)      # biased variance, as in module
    inv = jax.lax.rsqrt(var + LN_EPS)
    o_ref[0] = (d * inv * g_ref[...] + b_ref[...]).astype(o_ref.dtype)


def _pick_tile(C, L, target_bytes=1 << 20):
    # lane tile: multiple of 128, sized so one (C, TL) f32 block is ~target_bytes
    l128 = pl.cdiv(L, 128) * 128
    tl = max(128, (target_bytes // (4 * max(C, 1))) // 128 * 128)
    return min(l128, tl)


def conv_layer_norm(x, gamma, beta):
    """Channel-first LayerNorm over dim 1 of an NCHW tensor (one modality)."""
    N, C, H, W = x.shape
    L = H * W
    xr = x.reshape(N, C, L)                            # free, contiguous reshape

    TL = _pick_tile(C, L)
    Lp = pl.cdiv(L, TL) * TL
    if Lp != L:
        # padded columns are independent (LN is per spatial position) and sliced off
        xr = jnp.pad(xr, ((0, 0), (0, 0), (0, Lp - L)))

    g2 = gamma.reshape(C, 1).astype(jnp.float32)
    b2 = beta.reshape(C, 1).astype(jnp.float32)

    out = pl.pallas_call(
        _conv_ln_kernel,
        out_shape=jax.ShapeDtypeStruct((N, C, Lp), x.dtype),
        grid=(N, Lp // TL),
        in_specs=[
            pl.BlockSpec((1, C, TL), lambda n, l: (n, 0, l)),
            pl.BlockSpec((C, 1), lambda n, l: (0, 0)),   # stays VMEM-resident
            pl.BlockSpec((C, 1), lambda n, l: (0, 0)),   # stays VMEM-resident
        ],
        out_specs=pl.BlockSpec((1, C, TL), lambda n, l: (n, 0, l)),
        compiler_params=pltpu.CompilerParams(
            dimension_semantics=("parallel", "parallel"),
            vmem_limit_bytes=32 * 1024 * 1024,
        ),
    )(xr, g2, b2)

    if Lp != L:
        out = out[:, :, :L]
    return out.reshape(N, C, H, W)


def layer_norm_parallel(x_parallel, weights, biases):
    """Forward of LayerNormParallel: one ConvLayerNorm (own gamma/beta) per modality."""
    return [conv_layer_norm(x, w, b)
            for x, w, b in zip(x_parallel, weights, biases)]


# ---------------------------------------------------------------------------
# Pure-JAX reference (mirrors the PyTorch module) for verification
# ---------------------------------------------------------------------------
def _reference(x_parallel, weights, biases):
    outs = []
    for x, w, b in zip(x_parallel, weights, biases):
        u = x.mean(1, keepdims=True)
        s = jnp.square(x - u).mean(1, keepdims=True)
        y = (x - u) / jnp.sqrt(s + LN_EPS)
        outs.append(w[None, :, None, None] * y + b[None, :, None, None])
    return outs


if __name__ == "__main__":
    num_modals = 4              # module default
    N, C, H, W = 2, 32, 16, 16  # small shapes: batch=2, num_features=32, spatial=16

    key = jax.random.PRNGKey(0)
    keys = jax.random.split(key, 3 * num_modals)

    xs = [jax.random.normal(keys[i], (N, C, H, W), dtype=jnp.float32) * 2.0 + 0.5
          for i in range(num_modals)]
    # module initializes weight=ones / bias=zeros; use perturbed values so the
    # affine part of the forward is actually exercised
    ws = [1.0 + 0.1 * jax.random.normal(keys[num_modals + i], (C,), dtype=jnp.float32)
          for i in range(num_modals)]
    bs = [0.1 * jax.random.normal(keys[2 * num_modals + i], (C,), dtype=jnp.float32)
          for i in range(num_modals)]

    outs = layer_norm_parallel(xs, ws, bs)
    outs = [jax.block_until_ready(o) for o in outs]

    refs = _reference(xs, ws, bs)
    for o, r in zip(outs, refs):
        assert o.shape == r.shape, (o.shape, r.shape)
        assert jnp.allclose(o, r, rtol=1e-4, atol=1e-4), float(jnp.max(jnp.abs(o - r)))

    # odd spatial size -> exercises the lane-padding path (L not a multiple of 128)
    x_odd = jax.random.normal(jax.random.PRNGKey(1), (1, C, 10, 10), dtype=jnp.float32)
    o_odd = jax.block_until_ready(conv_layer_norm(x_odd, ws[0], bs[0]))
    r_odd = _reference([x_odd], [ws[0]], [bs[0]])[0]
    assert jnp.allclose(o_odd, r_odd, rtol=1e-4, atol=1e-4), \
        float(jnp.max(jnp.abs(o_odd - r_odd)))

    print("KERNEL_OK")
</pallas_src>

<mosaic_0001>
module attributes {stable_mosaic.version = 11 : i64} {
  func.func @_conv_ln_kernel(%arg0: i32, %arg1: i32, %arg2: memref<1x32x256xf32, #tpu.memory_space<vmem>>, %arg3: memref<32x1xf32, #tpu.memory_space<vmem>>, %arg4: memref<32x1xf32, #tpu.memory_space<vmem>>, %arg5: memref<1x32x256xf32, #tpu.memory_space<vmem>>) attributes {dimension_semantics = [#tpu.dimension_semantics<parallel>, #tpu.dimension_semantics<parallel>], iteration_bounds = array<i64: 2, 1>, scalar_prefetch = 0 : i64, scratch_operands = 0 : i64, tpu.core_type = #tpu.core_type<tc>, window_params = [{transform_indices = @transform_0, window_bounds = array<i64: 1, 32, 256>}, {pipeline_mode = #tpu.pipeline_mode<synchronous>, transform_indices = @transform_1, window_bounds = array<i64: 32, 1>}, {pipeline_mode = #tpu.pipeline_mode<synchronous>, transform_indices = @transform_2, window_bounds = array<i64: 32, 1>}, {transform_indices = @transform_3, window_bounds = array<i64: 1, 32, 256>}]} {
    %c0 = arith.constant 0 : index
    %c0_0 = arith.constant 0 : index
    %c0_1 = arith.constant 0 : index
    %0 = vector.load %arg2[%c0, %c0_0, %c0_1] : memref<1x32x256xf32, #tpu.memory_space<vmem>>, vector<1x32x256xf32>
    %1 = vector.shape_cast %0 : vector<1x32x256xf32> to vector<32x256xf32>
    %cst = arith.constant dense<0.000000e+00> : vector<256xf32>
    %2 = vector.multi_reduction <add>, %1, %cst [0] : vector<32x256xf32> to vector<256xf32>
    %3 = vector.shape_cast %2 : vector<256xf32> to vector<1x256xf32>
    %cst_2 = arith.constant 3.200000e+01 : f32
    %4 = vector.broadcast %cst_2 : f32 to vector<1x256xf32>
    %5 = arith.divf %3, %4 : vector<1x256xf32>
    %6 = vector.broadcast %5 : vector<1x256xf32> to vector<32x256xf32>
    %7 = arith.subf %1, %6 : vector<32x256xf32>
    %8 = arith.mulf %7, %7 : vector<32x256xf32>
    %cst_3 = arith.constant dense<0.000000e+00> : vector<256xf32>
    %9 = vector.multi_reduction <add>, %8, %cst_3 [0] : vector<32x256xf32> to vector<256xf32>
    %10 = vector.shape_cast %9 : vector<256xf32> to vector<1x256xf32>
    %cst_4 = arith.constant 3.200000e+01 : f32
    %11 = vector.broadcast %cst_4 : f32 to vector<1x256xf32>
    %12 = arith.divf %10, %11 : vector<1x256xf32>
    %cst_5 = arith.constant 9.99999997E-7 : f32
    %13 = vector.broadcast %cst_5 : f32 to vector<1x256xf32>
    %14 = arith.addf %12, %13 : vector<1x256xf32>
    %15 = math.rsqrt %14 : vector<1x256xf32>
    %16 = vector.broadcast %15 : vector<1x256xf32> to vector<32x256xf32>
    %17 = arith.mulf %7, %16 : vector<32x256xf32>
    %c0_6 = arith.constant 0 : index
    %c0_7 = arith.constant 0 : index
    %18 = vector.load %arg3[%c0_6, %c0_7] : memref<32x1xf32, #tpu.memory_space<vmem>>, vector<32x1xf32>
    %19 = vector.broadcast %18 : vector<32x1xf32> to vector<32x256xf32>
    %20 = arith.mulf %17, %19 : vector<32x256xf32>
    %c0_8 = arith.constant 0 : index
    %c0_9 = arith.constant 0 : index
    %21 = vector.load %arg4[%c0_8, %c0_9] : memref<32x1xf32, #tpu.memory_space<vmem>>, vector<32x1xf32>
    %22 = vector.broadcast %21 : vector<32x1xf32> to vector<32x256xf32>
    %23 = arith.addf %20, %22 : vector<32x256xf32>
    %c0_10 = arith.constant 0 : index
    %c0_11 = arith.constant 0 : index
    %c0_12 = arith.constant 0 : index
    %24 = vector.load %arg5[%c0_10, %c0_11, %c0_12] : memref<1x32x256xf32, #tpu.memory_space<vmem>>, vector<1x32x256xf32>
    %25 = vector.shape_cast %24 : vector<1x32x256xf32> to vector<32x256xf32>
    %26 = vector.shape_cast %23 : vector<32x256xf32> to vector<1x32x256xf32>
    tpu.vector_store %arg5[%c0_10, %c0_11, %c0_12], %26 {strides = array<i32>} : memref<1x32x256xf32, #tpu.memory_space<vmem>>, vector<1x32x256xf32>,
    return
  }
  func.func @transform_0(%arg0: i32, %arg1: i32) -> (i32, i32, i32) {
    %c0_i32 = arith.constant 0 : i32
    %c0_i32_0 = arith.constant 0 : i32
    return %arg0, %c0_i32, %arg1 : i32, i32, i32
  }
  func.func @transform_1(%arg0: i32, %arg1: i32) -> (i32, i32) {
    %c0_i32 = arith.constant 0 : i32
    %c0_i32_0 = arith.constant 0 : i32
    %c0_i32_1 = arith.constant 0 : i32
    return %c0_i32, %c0_i32_0 : i32, i32
  }
  func.func @transform_2(%arg0: i32, %arg1: i32) -> (i32, i32) {
    %c0_i32 = arith.constant 0 : i32
    %c0_i32_0 = arith.constant 0 : i32
    %c0_i32_1 = arith.constant 0 : i32
    return %c0_i32, %c0_i32_0 : i32, i32
  }
  func.func @transform_3(%arg0: i32, %arg1: i32) -> (i32, i32, i32) {
    %c0_i32 = arith.constant 0 : i32
    %c0_i32_0 = arith.constant 0 : i32
    return %arg0, %c0_i32, %arg1 : i32, i32, i32
  }
}

</mosaic_0001>

<llo_original>
// kernel: tpu_custom_call.1
$region0: #{tpu_custom_call.1}
  #allocation0 [shape = 'u32[]', space=smem, size = 0x4, offset = 0x4, fixed_abs, tag = 'smem constant byte address 0x4 - core index']
  #allocation1 [shape = 'u32[72,128]{1,0:T(1,128)}', space=vmem, size = 0x9000, scoped, tag = 'internal scratch']
  %s0 = inlined_call_operand.hbm [shape: f32[2,32,256], index: 0, kind: input, shape index: {}]
  %s1 = inlined_call_operand.vmem [shape: f32[32,1], index: 1, kind: input, shape index: {}]
  %s2 = inlined_call_operand.vmem [shape: f32[32,1], index: 2, kind: input, shape index: {}]
  %s3 = inlined_call_operand.hbm [shape: f32[2,32,256], index: 3, kind: output, shape index: {}]
  %s4 = sld [smem:[#allocation0]]
  $region49: #{tpu_custom_call.1} parent=0
    _
  %s6 = ssub.s32 1, %s4
  %s7 = scalar_select 0, %s6, %s4
  $region1: #{tpu_custom_call.1} parent=0
    #allocation2 [shape = 'u8[65536]{0}', space=vmem, size = 0x10000, scoped, tag = 'input window, operand 0']
    #allocation3 [shape = 's32[2]{0}', space=sflag, size = 0x8, scoped, tag = 'scoped memory for tpu_custom_call.1']
    #allocation4 [shape = 's32[2]{0}', space=sflag, size = 0x8, scoped, tag = 'scoped memory for tpu_custom_call.1']
    #allocation5 [shape = 'u8[65536]{0}', space=vmem, size = 0x10000, scoped, tag = 'output window, operand 0']
    %8 = vsyncpa [#allocation3], 0
    %s9 = scalar_lea.sflag [#allocation3], 1
    %10 = vsyncpa %s9, 0
    %11 = vsyncpa [#allocation4], 0
    %s12 = scalar_lea.sflag [#allocation4], 1
    %13 = vsyncpa %s12, 0
    loop: start=0, step=1, limit=4
    $region2: #{tpu_custom_call.1} parent=1 // loop_pre_header
      _
    $region3: #{tpu_custom_call.1} parent=1 // loop_header
      %s15 = sphi 0, %s19
      %p16 = scmp.ge.s32.totalorder %s15, 4
      %s22 = sphi 0, %s34
      %s23 = sphi 0, %s30
      %s24 = sphi 0, %s22
      %s25 = sphi 0, %s23
      %s26 = sphi 0, %s24
      %s27 = sphi 0, %s25
      %s39 = sphi 0, %s41
      %s42 = sphi 0, %s39
      %s43 = sphi 0, %s42
      %s59 = sphi 0, %s43
      %s63 = sphi 0, %s63
      %s65 = sphi 0, %s63
      %s66 = sphi 0, %s65
      %s80 = sphi 0, %s66
      %s84 = sphi 0, %s84
      %s86 = sphi 0, %s84
      %s87 = sphi 0, %s86
      %s101 = sphi 0, %s87
      %s109 = sphi 0, %s111
      %s112 = sphi 0, %s109
      %s113 = sphi 0, %s112
      %s129 = sphi 0, %s113
    $region4: #{tpu_custom_call.1} parent=1 // loop_header_branch
      %18 = sbr.rel (%p16) target = $region8
    $region5: #{tpu_custom_call.1} parent=1 // loop_body
      %s20 = ssub.s32 %s15, 1
      %s21 = ssub.s32 %s15, 2
      %s28 = sadd.s32 1, %s23
      %p29 = scmp.ge.s32.totalorder %s28, 1
      %s30 = scalar_select %p29, 0, %s28
      %s31 = sadd.s32 1, %s22
      %s32 = scalar_select %p29, %s31, %s22
      %p33 = scmp.ge.s32.totalorder %s32, 2
      %s34 = scalar_select %p33, 0, %s32
      %s35 = ssub.s32 %s22, %s34
      %s36 = ssub.s32 %s23, %s30
      %s37 = sor.u32 %s35, %s36
      %p38 = scmp.eq.s32.totalorder %s37, 0
      %s40 = sadd.s32 %s39, 1
      %s41 = scalar_select %p38, %s39, %s40
      %p44 = pneg %p38
      %p45 = scmp.eq.s32.totalorder %s15, 1
      %p46 = por %p44, %p45
      %p47 = scmp.ne.s32.totalorder %s39, %s42
      %p48 = scmp.eq.s32.totalorder %s15, 0
      %p49 = por %p47, %p48
      %p50 = scmp.ne.s32.totalorder %s39, %s42
      %p51 = scmp.eq.s32.totalorder %s20, 1
      %p52 = por %p50, %p51
      %p53 = scmp.ne.s32.totalorder %s42, %s43
      %p54 = scmp.eq.s32.totalorder %s20, 0
      %p55 = por %p53, %p54
      %p56 = scmp.ne.s32.totalorder %s42, %s43
      %p57 = scmp.eq.s32.totalorder %s21, 1
      %p58 = por %p56, %p57
      %p60 = scmp.ne.s32.totalorder %s43, %s59
      %p61 = scmp.eq.s32.totalorder %s21, 0
      %p62 = por %p60, %p61
      %s64 = sadd.s32 %s63, 1
      %p67 = scmp.eq.s32.totalorder %s15, 1
      %p68 = scmp.ne.s32.totalorder %s63, %s65
      %p69 = scmp.eq.s32.totalorder %s15, 0
      %p70 = por %p68, %p69
      %p71 = scmp.ne.s32.totalorder %s63, %s65
      %p72 = scmp.eq.s32.totalorder %s20, 1
      %p73 = por %p71, %p72
      %p74 = scmp.ne.s32.totalorder %s65, %s66
      %p75 = scmp.eq.s32.totalorder %s20, 0
      %p76 = por %p74, %p75
      %p77 = scmp.ne.s32.totalorder %s65, %s66
      %p78 = scmp.eq.s32.totalorder %s21, 1
      %p79 = por %p77, %p78
      %p81 = scmp.ne.s32.totalorder %s66, %s80
      %p82 = scmp.eq.s32.totalorder %s21, 0
      %p83 = por %p81, %p82
      %s85 = sadd.s32 %s84, 1
      %p88 = scmp.eq.s32.totalorder %s15, 1
      %p89 = scmp.ne.s32.totalorder %s84, %s86
      %p90 = scmp.eq.s32.totalorder %s15, 0
      %p91 = por %p89, %p90
      %p92 = scmp.ne.s32.totalorder %s84, %s86
      %p93 = scmp.eq.s32.totalorder %s20, 1
      %p94 = por %p92, %p93
      %p95 = scmp.ne.s32.totalorder %s86, %s87
      %p96 = scmp.eq.s32.totalorder %s20, 0
      %p97 = por %p95, %p96
      %p98 = scmp.ne.s32.totalorder %s86, %s87
      %p99 = scmp.eq.s32.totalorder %s21, 1
      %p100 = por %p98, %p99
      %p102 = scmp.ne.s32.totalorder %s87, %s101
      %p103 = scmp.eq.s32.totalorder %s21, 0
      %p104 = por %p102, %p103
      %s105 = ssub.s32 %s22, %s34
      %s106 = ssub.s32 %s23, %s30
      %s107 = sor.u32 %s105, %s106
      %p108 = scmp.eq.s32.totalorder %s107, 0
      %s110 = sadd.s32 %s109, 1
      %s111 = scalar_select %p108, %s109, %s110
      %p114 = pneg %p108
      %p115 = scmp.eq.s32.totalorder %s15, 1
      %p116 = por %p114, %p115
      %p117 = scmp.ne.s32.totalorder %s109, %s112
      %p118 = scmp.eq.s32.totalorder %s15, 0
      %p119 = por %p117, %p118
      %p120 = scmp.ne.s32.totalorder %s109, %s112
      %p121 = scmp.eq.s32.totalorder %s20, 1
      %p122 = por %p120, %p121
      %p123 = scmp.ne.s32.totalorder %s112, %s113
      %p124 = scmp.eq.s32.totalorder %s20, 0
      %p125 = por %p123, %p124
      %p126 = scmp.ne.s32.totalorder %s112, %s113
      %p127 = scmp.eq.s32.totalorder %s21, 1
      %p128 = por %p126, %p127
      %p130 = scmp.ne.s32.totalorder %s113, %s129
      %p131 = scmp.eq.s32.totalorder %s21, 0
      %p132 = por %p130, %p131
      %p133 = scmp.le.s32.totalorder 1, %s15
      %p134 = scmp.lt.s32.totalorder %s15, 3
      %p135 = pnand %p133, %p134
      %p136 = pneg %p135
      // Predicated region
      $region9: #{tpu_custom_call.1} parent=5 // pred_check
        _
      $region10: #{tpu_custom_call.1} parent=5 // pred_check_branch
        %138 = sbr.rel (%p135) target = $region12
      $region11: #{tpu_custom_call.1} parent=5 // pred_region
        %s139 = ssub.s32 %s15, 1
        // Predicated region
        $region13: #{tpu_custom_call.1} parent=11 // pred_check
          %p140 = pneg %p76
        $region14: #{tpu_custom_call.1} parent=11 // pred_check_branch
          %142 = sbr.rel (%p140) target = $region16
        $region15: #{tpu_custom_call.1} parent=11 // pred_region
          _
        $region16: #{tpu_custom_call.1} parent=11 // pred_fallthru
          _
        // Predicated region
        $region17: #{tpu_custom_call.1} parent=11 // pred_check
          %p143 = pneg %p97
        $region18: #{tpu_custom_call.1} parent=11 // pred_check_branch
          %145 = sbr.rel (%p143) target = $region20
        $region19: #{tpu_custom_call.1} parent=11 // pred_region
          _
        $region20: #{tpu_custom_call.1} parent=11 // pred_fallthru
          _
      $region12: #{tpu_custom_call.1} parent=5 // pred_fallthru
        _
      %p146 = scmp.lt.s32.totalorder %s15, 2
      // Predicated region
      $region21: #{tpu_custom_call.1} parent=5 // pred_check
        %p147 = pneg %p146
      $region22: #{tpu_custom_call.1} parent=5 // pred_check_branch
        %149 = sbr.rel (%p147) target = $region24
      $region23: #{tpu_custom_call.1} parent=5 // pred_region
        // Predicated region
        $region25: #{tpu_custom_call.1} parent=23 // pred_check
          %p150 = pneg %p49
        $region26: #{tpu_custom_call.1} parent=23 // pred_check_branch
          %152 = sbr.rel (%p150) target = $region28
        $region27: #{tpu_custom_call.1} parent=23 // pred_region
          %s153 = sand.u32 %s39, 1
          %s154 = scalar_lea.sflag [#allocation3], %s153
          %s155 = sand.u32 %s39, 1
          %s156 = smul.addr %s155, 64
          %s157 = scalar_lea.vmem [#allocation2], %s156
          %s158 = smul.u32 2, %s23
          %160 = vsyncadd %s154, 0
          %s161 = smul.addr %s22, 8
          %s162 = sadd.s32 %s158, %s161
          %s163 = smul.addr %s162, 8
          %s164 = scalar_lea.hbm %s0, %s163
          %s165 = sshll.u32 %s164, 4
          %s166 = int_to_ptr.hbm [resolvable:$true] %s165
          %s167 = sshll.u32 %s157, 4
          %s168 = int_to_ptr.vmem [resolvable:$true] %s167
          %173 = dma.hbm_to_vmem [thread:$0]  %s166, 1024, %s168, %s154, 256, 256, 16
        $region28: #{tpu_custom_call.1} parent=23 // pred_fallthru
          _
      $region24: #{tpu_custom_call.1} parent=5 // pred_fallthru
        _
      %p174 = scmp.le.s32.totalorder 1, %s15
      %p175 = scmp.lt.s32.totalorder %s15, 3
      %p176 = pnand %p174, %p175
      %p177 = pneg %p176
      // Predicated region
      $region29: #{tpu_custom_call.1} parent=5 // pred_check
        _
      $region30: #{tpu_custom_call.1} parent=5 // pred_check_branch
        %179 = sbr.rel (%p176) target = $region32
      $region31: #{tpu_custom_call.1} parent=5 // pred_region
        %s180 = ssub.s32 %s15, 1
        %s181 = sand.u32 %s42, 1
        %s182 = scalar_lea.sflag [#allocation3], %s181
        %s183 = sand.u32 %s42, 1
        %s184 = smul.addr %s183, 64
        %s185 = scalar_lea.vmem [#allocation2], %s184
        // Predicated region
        $region33: #{tpu_custom_call.1} parent=31 // pred_check
          %p186 = pneg %p55
        $region34: #{tpu_custom_call.1} parent=31 // pred_check_branch
          %188 = sbr.rel (%p186) target = $region36
        $region35: #{tpu_custom_call.1} parent=31 // pred_region
          %190 = dma.done %s182, 1024
        $region36: #{tpu_custom_call.1} parent=31 // pred_fallthru
          _
        %s191 = sand.u32 %s42, 1
        %s192 = scalar_lea.sflag [#allocation3], %s191
        %s193 = sand.u32 %s42, 1
        %s194 = smul.addr %s193, 64
        %s195 = scalar_lea.vmem [#allocation2], %s194
        %p196 = pneg %p55
        %p197 = pneg %p52
        %p198 = pneg %p76
        %p199 = pneg %p73
        %p200 = pneg %p97
        %p201 = pneg %p94
        %p202 = pneg %p125
        %p203 = pneg %p122
        %s204 = sand.u32 %s112, 1
        %s205 = scalar_lea.sflag [#allocation4], %s204
        %s206 = sand.u32 %s112, 1
        %s207 = smul.addr %s206, 64
        %s208 = scalar_lea.vmem [#allocation5], %s207
        %s209 = smul.u32 2, %s25
        %s210 = smul.u32 2, %s25
        %v211 = vld [vmem:[%s185] sm:$0xff]
        %v212 = vld [vmem:[%s185 + $0x8] sm:$0xff]
        %v213 = vld [vmem:[%s185 + $0x10] sm:$0xff]
        %v214 = vld [vmem:[%s185 + $0x18] sm:$0xff]
        %v215 = vld [vmem:[%s185 + $0x20] sm:$0xff]
        %v216 = vld [vmem:[%s185 + $0x28] sm:$0xff]
        %v217 = vld [vmem:[%s185 + $0x30] sm:$0xff]
        %v218 = vld [vmem:[%s185 + $0x38] sm:$0xff]
        %v219 = vadd.f32 %v211, %v213
        %v220 = vadd.f32 %v219, %v215
        %v221 = vadd.f32 %v220, %v217
        %v222 = vrot.slane %v221, 4
        %v223 = vadd.f32 %v221, %v222
        %v224 = vrot.slane %v223, 2
        %v225 = vadd.f32 %v223, %v224
        %v226 = vrot.slane %v225, 1
        %v227 = vadd.f32 %v225, %v226
        %v228 = vadd.f32 %v212, %v214
        %v229 = vadd.f32 %v228, %v216
        %v230 = vadd.f32 %v229, %v218
        %v231 = vrot.slane %v230, 4
        %v232 = vadd.f32 %v230, %v231
        %v233 = vrot.slane %v232, 2
        %v234 = vadd.f32 %v232, %v233
        %v235 = vrot.slane %v234, 1
        %v236 = vadd.f32 %v234, %v235
        %v237 = vrcp.pop 32.0
        %v238 = vmul.f32 32.0, %v237
        %v239 = vsub.f32 1.0, %v238
        %v240 = vmul.f32 %v237, %v239
        %v241 = vadd.f32 %v237, %v240
        %vm242 = vweird.f32 %v237
        %v243 = vsel %vm242, %v237, %v241
        %v244 = vmul.f32 %v227, %v243
        %v245 = vmul.f32 %v236, %v243
        %v246 = vsub.f32 %v211, %v244
        %v247 = vsub.f32 %v212, %v245
        %v248 = vsub.f32 %v213, %v244
        %v249 = vsub.f32 %v214, %v245
        %v250 = vsub.f32 %v215, %v244
        %v251 = vsub.f32 %v216, %v245
        %v252 = vsub.f32 %v217, %v244
        %v253 = vsub.f32 %v218, %v245
        %v254 = vmul.f32 %v246, %v246
        %v255 = vmul.f32 %v247, %v247
        %v256 = vmul.f32 %v248, %v248
        %v257 = vmul.f32 %v249, %v249
        %v258 = vmul.f32 %v250, %v250
        %v259 = vmul.f32 %v251, %v251
        %v260 = vmul.f32 %v252, %v252
        %v261 = vmul.f32 %v253, %v253
        %v262 = vadd.f32 %v254, %v256
        %v263 = vadd.f32 %v262, %v258
        %v264 = vadd.f32 %v263, %v260
        %v265 = vrot.slane %v264, 4
        %v266 = vadd.f32 %v264, %v265
        %v267 = vrot.slane %v266, 2
        %v268 = vadd.f32 %v266, %v267
        %v269 = vrot.slane %v268, 1
        %v270 = vadd.f32 %v268, %v269
        %v271 = vadd.f32 %v255, %v257
        %v272 = vadd.f32 %v271, %v259
        %v273 = vadd.f32 %v272, %v261
        %v274 = vrot.slane %v273, 4
        %v275 = vadd.f32 %v273, %v274
        %v276 = vrot.slane %v275, 2
        %v277 = vadd.f32 %v275, %v276
        %v278 = vrot.slane %v277, 1
        %v279 = vadd.f32 %v277, %v278
        %v280 = vmul.f32 %v270, %v243
        %v281 = vmul.f32 %v279, %v243
        %v282 = vadd.f32 %v280, 1e-06
        %v283 = vadd.f32 %v281, 1e-06
        %v284 = vrsqrt.pop %v282
        %v285 = vmul.f32 %v284, %v282
        %v286 = vmul.f32 %v285, %v284
        %v287 = vmul.f32 0.5, %v286
        %v288 = vsub.f32 1.5, %v287
        %v289 = vmul.f32 %v284, %v288
        %vm290 = vweird.f32 %v282
        %vm291 = vweird.f32 %v284
        %vm292 = vmor %vm290, %vm291
        %v293 = vsel %vm292, %v284, %v289
        %v294 = vrsqrt.pop %v283
        %v295 = vmul.f32 %v294, %v283
        %v296 = vmul.f32 %v295, %v294
        %v297 = vmul.f32 0.5, %v296
        %v298 = vsub.f32 1.5, %v297
        %v299 = vmul.f32 %v294, %v298
        %vm300 = vweird.f32 %v283
        %vm301 = vweird.f32 %v294
        %vm302 = vmor %vm300, %vm301
        %v303 = vsel %vm302, %v294, %v299
        %v304 = vmul.f32 %v246, %v293
        %v305 = vmul.f32 %v247, %v303
        %v306 = vmul.f32 %v248, %v293
        %v307 = vmul.f32 %v249, %v303
        %v308 = vmul.f32 %v250, %v293
        %v309 = vmul.f32 %v251, %v303
        %v310 = vmul.f32 %v252, %v293
        %v311 = vmul.f32 %v253, %v303
        %v312 = vld [vmem:[%s1] sm:$0xff]
        %v313 = vld [vmem:[%s1 + $0x8] sm:$0xff]
        %v314 = vld [vmem:[%s1 + $0x10] sm:$0xff]
        %v315 = vld [vmem:[%s1 + $0x18] sm:$0xff]
        %317 = vset.pattern.permute.xlu0 0
        %318 = vperm.xlu0 %317, %v312
        %v319 = vpop.permute.xlu0 %318
        %322 = vset.pattern.permute.xlu0 0
        %323 = vperm.xlu0 %322, %v313
        %v324 = vpop.permute.xlu0 %323
        %327 = vset.pattern.permute.xlu0 0
        %328 = vperm.xlu0 %327, %v314
        %v329 = vpop.permute.xlu0 %328
        %332 = vset.pattern.permute.xlu0 0
        %333 = vperm.xlu0 %332, %v315
        %v334 = vpop.permute.xlu0 %333
        %v336 = vmul.f32 %v304, %v319
        %v337 = vmul.f32 %v305, %v319
        %v338 = vmul.f32 %v306, %v324
        %v339 = vmul.f32 %v307, %v324
        %v340 = vmul.f32 %v308, %v329
        %v341 = vmul.f32 %v309, %v329
        %v342 = vmul.f32 %v310, %v334
        %v343 = vmul.f32 %v311, %v334
        %v344 = vld [vmem:[%s2] sm:$0xff]
        %v345 = vld [vmem:[%s2 + $0x8] sm:$0xff]
        %v346 = vld [vmem:[%s2 + $0x10] sm:$0xff]
        %v347 = vld [vmem:[%s2 + $0x18] sm:$0xff]
        %349 = vset.pattern.permute.xlu0 0
        %350 = vperm.xlu0 %349, %v344
        %v351 = vpop.permute.xlu0 %350
        %354 = vset.pattern.permute.xlu0 0
        %355 = vperm.xlu0 %354, %v345
        %v356 = vpop.permute.xlu0 %355
        %359 = vset.pattern.permute.xlu0 0
        %360 = vperm.xlu0 %359, %v346
        %v361 = vpop.permute.xlu0 %360
        %364 = vset.pattern.permute.xlu0 0
        %365 = vperm.xlu0 %364, %v347
        %v366 = vpop.permute.xlu0 %365
        %v368 = vadd.f32 %v336, %v351
        %v369 = vadd.f32 %v337, %v351
        %v370 = vadd.f32 %v338, %v356
        %v371 = vadd.f32 %v339, %v356
        %v372 = vadd.f32 %v340, %v361
        %v373 = vadd.f32 %v341, %v361
        %v374 = vadd.f32 %v342, %v366
        %v375 = vadd.f32 %v343, %v366
        %376 = vst [vmem:[%s208] sm:$0xff] %v368
        %377 = vst [vmem:[%s208 + $0x8] sm:$0xff] %v369
        %378 = vst [vmem:[%s208 + $0x10] sm:$0xff] %v370
        %379 = vst [vmem:[%s208 + $0x18] sm:$0xff] %v371
        %380 = vst [vmem:[%s208 + $0x20] sm:$0xff] %v372
        %381 = vst [vmem:[%s208 + $0x28] sm:$0xff] %v373
        %382 = vst [vmem:[%s208 + $0x30] sm:$0xff] %v374
        %383 = vst [vmem:[%s208 + $0x38] sm:$0xff] %v375
        %s384 = sand.u32 %s112, 1
        %s385 = scalar_lea.sflag [#allocation4], %s384
        %s386 = sand.u32 %s112, 1
        %s387 = smul.addr %s386, 64
        %s388 = scalar_lea.vmem [#allocation5], %s387
        // Predicated region
        $region37: #{tpu_custom_call.1} parent=31 // pred_check
          %p389 = pneg %p122
        $region38: #{tpu_custom_call.1} parent=31 // pred_check_branch
          %391 = sbr.rel (%p389) target = $region40
        $region39: #{tpu_custom_call.1} parent=31 // pred_region
          %s392 = smul.u32 2, %s25
          %394 = vsyncadd %s385, 0
          %s395 = smul.addr %s24, 8
          %s396 = sadd.s32 %s392, %s395
          %s397 = smul.addr %s396, 8
          %s398 = scalar_lea.hbm %s3, %s397
          %s399 = sshll.u32 %s388, 4
          %s400 = int_to_ptr.vmem [resolvable:$true] %s399
          %s401 = sshll.u32 %s398, 4
          %s402 = int_to_ptr.hbm [resolvable:$true] %s401
          %407 = dma.vmem_to_hbm [thread:$0]  %s400, 1024, %s402, %s385, 256, 256, 16
        $region40: #{tpu_custom_call.1} parent=31 // pred_fallthru
          _
      $region32: #{tpu_custom_call.1} parent=5 // pred_fallthru
        _
      %p408 = scmp.le.s32.totalorder 2, %s15
      // Predicated region
      $region41: #{tpu_custom_call.1} parent=5 // pred_check
        %p409 = pneg %p408
      $region42: #{tpu_custom_call.1} parent=5 // pred_check_branch
        %411 = sbr.rel (%p409) target = $region44
      $region43: #{tpu_custom_call.1} parent=5 // pred_region
        %s412 = ssub.s32 %s15, 2
        // Predicated region
        $region45: #{tpu_custom_call.1} parent=43 // pred_check
          %p413 = pneg %p128
        $region46: #{tpu_custom_call.1} parent=43 // pred_check_branch
          %415 = sbr.rel (%p413) target = $region48
        $region47: #{tpu_custom_call.1} parent=43 // pred_region
          %s416 = sand.u32 %s113, 1
          %s417 = scalar_lea.sflag [#allocation4], %s416
          %s418 = sand.u32 %s113, 1
          %s419 = smul.addr %s418, 64
          %s420 = scalar_lea.vmem [#allocation5], %s419
          %422 = dma.done %s417, 1024
        $region48: #{tpu_custom_call.1} parent=43 // pred_fallthru
          _
      $region44: #{tpu_custom_call.1} parent=5 // pred_fallthru
        _
    $region6: #{tpu_custom_call.1} parent=1 // loop_footer
      %s19 = sadd.s32 1, %s15
    $region7: #{tpu_custom_call.1} parent=1 // loop_footer_branch
      %14 = sbr.rel target = $region3
    $region8: #{tpu_custom_call.1} parent=1 // loop_exit
      _
    %423 = vsyncpa [#allocation3], 1
    %s424 = scalar_lea.sflag [#allocation3], 1
    %425 = vsyncpa %s424, 1
    %426 = vsyncpa [#allocation4], 1
    %s427 = scalar_lea.sflag [#allocation4], 1
    %428 = vsyncpa %s427, 1

</llo_original>
